<compile_context>
chip_gen: v7x
topology: tpu7x:2x2x1
jax: 0.10.0
libtpu: 0.0.40
codegen_flags: <defaults>
</compile_context>

<pallas_src>
import functools
import numpy as np
import jax
import jax.numpy as jnp
from jax.experimental import pallas as pl
from jax.experimental.pallas import tpu as pltpu


# ============================================================================
# Kernel 1: fused front-end  (STFT power -> Slaney log-mel -> bilinear resize)
# ============================================================================

def _frontend_kernel(frames_ref, cos_ref, sin_ref, mel_ref, whbd_ref, wwt_ref,
                     img_ref, *, top_db):
    # frames: (B*Tf, n_fft) bf16; batch folded into M for full sublane fill.
    f = frames_ref[...]
    re = jnp.dot(f, cos_ref[...], preferred_element_type=jnp.float32)
    im = jnp.dot(f, sin_ref[...], preferred_element_type=jnp.float32)
    power = re * re + im * im                                   # (B*Tf, 128) f32
    mel = jnp.dot(power.astype(jnp.bfloat16), mel_ref[...],
                  preferred_element_type=jnp.float32)           # (B*Tf, n_mels)
    # torchlibrosa power_to_db (ref=1, amin=1e-10); top_db clamp optional.
    logmel = (10.0 / np.log(10.0)) * jnp.log(jnp.maximum(mel, 1e-10))
    if top_db is not None:
        logmel = jnp.maximum(logmel, jnp.max(logmel) - top_db)
    # Bilinear resize: rows of the block-diagonal time matrix pick this batch
    # item; the column matrix is shared.  Output tile is lane-dense (128,128).
    t = jnp.dot(whbd_ref[...], logmel.astype(jnp.bfloat16),
                preferred_element_type=jnp.float32)             # (128, n_mels)
    img_ref[...] = jnp.dot(t.astype(jnp.bfloat16), wwt_ref[...],
                           preferred_element_type=jnp.float32)  # (128, 128)


def pallas_frontend(frames, dft_cos, dft_sin, mel_fb, wh_bd, wwt, img_size,
                    batch, top_db=None):
    bt, n_fft = frames.shape
    n_bins = dft_cos.shape[1]
    n_mels = mel_fb.shape[1]
    return pl.pallas_call(
        functools.partial(_frontend_kernel, top_db=top_db),
        out_shape=jax.ShapeDtypeStruct((batch, img_size, img_size),
                                       jnp.float32),
        grid_spec=pltpu.PrefetchScalarGridSpec(
            num_scalar_prefetch=0,
            grid=(batch,),
            in_specs=[
                pl.BlockSpec((bt, n_fft), lambda b: (0, 0)),
                pl.BlockSpec((n_fft, n_bins), lambda b: (0, 0)),
                pl.BlockSpec((n_fft, n_bins), lambda b: (0, 0)),
                pl.BlockSpec((n_bins, n_mels), lambda b: (0, 0)),
                pl.BlockSpec((img_size, bt), lambda b: (b, 0)),
                pl.BlockSpec((n_mels, img_size), lambda b: (0, 0)),
            ],
            out_specs=pl.BlockSpec((None, img_size, img_size),
                                   lambda b: (b, 0, 0)),
        ),
        compiler_params=pltpu.CompilerParams(
            dimension_semantics=("parallel",)),
    )(frames, dft_cos, dft_sin, mel_fb, wh_bd, wwt)


# ============================================================================
# Kernel 2: fully fused backbone
#   stem 3x3 s2 (1->16) + SiLU
#   4x [ depthwise 3x3 s2 + SiLU -> pointwise Cin->Cout ]
#   LayerNorm(C=128, eps=1e-6)  -> (tokens, 128) lane-dense store
# All intermediates stay in VMEM; stride-2 + zero padding in H is folded into
# tiny 0/1 selection matrices (MXU), the W-direction taps use pltpu.roll.
# ============================================================================

def _backbone_kernel(*refs, chans):
    img_ref = refs[0]
    o_ref = refs[-1]
    ln_g = refs[-3][...]
    ln_b = refs[-2][...]

    himg = img_ref.shape[0]                    # 128
    h0 = himg // 2                             # 64
    c0 = chans[0][0]                           # 16

    # ---- stem: 3x3 s2 conv (1 -> c0) + SiLU, entirely on the MXU -----------
    img = img_ref[...].astype(jnp.bfloat16)                          # (128,128)
    r = jnp.dot(refs[1][...], img, preferred_element_type=jnp.float32)
    g = refs[2][...]                                                 # (3*128, h0*c0)
    x = None
    for dy in range(3):
        rdy = r[dy * h0:(dy + 1) * h0].astype(jnp.bfloat16)          # (h0, 128)
        gdy = g[dy * himg:(dy + 1) * himg]                           # (128, h0*c0)
        part = jnp.dot(rdy, gdy, preferred_element_type=jnp.float32)
        x = part if x is None else x + part
    x = x + refs[3][...]
    x = x * jax.nn.sigmoid(x)                                        # SiLU, f32

    # ---- 4 depthwise-separable stride-2 blocks (LN fused into the last) ----
    h = w = h0
    c = c0
    nblk = len(chans)
    for k, (cin, cout) in enumerate(chans):
        base = 4 + 5 * k
        s_blk = refs[base + 0][...]            # (3*ho, h)   bf16, 0/1 row select
        dw_w = refs[base + 1][...]             # (9, cin)    f32
        dw_b = refs[base + 2][...]             # (1, cin)    f32
        pw_w = refs[base + 3][...]             # (cin, cout) bf16
        pw_b = refs[base + 4][...]             # (1, cout)   f32
        ho, wo = h // 2, w // 2
        wc = w * c

        # Row taps (2i+dy-1) with zero padding folded into s_blk (MXU).
        r = jnp.dot(s_blk, x.astype(jnp.bfloat16),
                    preferred_element_type=jnp.float32)              # (3*ho, wc)

        lane = jax.lax.broadcasted_iota(jnp.int32, (1, wc), 1)
        acc = None
        for dy in range(3):
            rdy = r[dy * ho:(dy + 1) * ho]                           # (ho, wc)
            # shifted column tap (col 2j-1) via XLU roll (jnp.roll convention:
            # contents move toward higher lane indices), zero-fill the wrap.
            rolled = pltpu.roll(rdy, shift=2 * c, axis=1)
            rolled = jnp.where(lane >= 2 * c, rolled, 0.0)
            v = rdy.reshape(ho, wo, 2 * c)                           # cols 2j / 2j+1
            vs = rolled.reshape(ho, wo, 2 * c)                       # cols 2j-2 / 2j-1
            t = (vs[:, :, c:] * dw_w[3 * dy + 0].reshape(1, 1, c)    # dx = 0
                 + v[:, :, :c] * dw_w[3 * dy + 1].reshape(1, 1, c)   # dx = 1
                 + v[:, :, c:] * dw_w[3 * dy + 2].reshape(1, 1, c))  # dx = 2
            acc = t if acc is None else acc + t

        y = acc + dw_b.reshape(1, 1, c)
        y = y * jax.nn.sigmoid(y)                                    # SiLU, f32
        y2 = y.reshape(ho * wo, c)
        z = jnp.dot(y2.astype(jnp.bfloat16), pw_w,
                    preferred_element_type=jnp.float32) + pw_b       # (ho*wo, cout)

        if k == nblk - 1:
            # LayerNorm(C, eps=1e-6) fused; lane-dense (tokens, 128) store.
            mean = jnp.mean(z, axis=-1, keepdims=True)
            zc = z - mean
            var = jnp.mean(zc * zc, axis=-1, keepdims=True)
            o_ref[...] = zc * jax.lax.rsqrt(var + 1e-6) * ln_g + ln_b
        else:
            x = z.reshape(ho, wo, cout).reshape(ho, wo * cout)
            h, w, c = ho, wo, cout


def pallas_backbone(image, params):
    batch = image.shape[0]
    img_size = image.shape[1]
    chans = tuple((int(b['pw_w'].shape[0]), int(b['pw_w'].shape[1]))
                  for b in params['blocks'])

    consts = [params['s_stem'], params['g_stem'], params['b_stem']]
    for blk in params['blocks']:
        consts += [blk['s'], blk['dw_w'], blk['dw_b'], blk['pw_w'], blk['pw_b']]
    consts += [params['ln_g'], params['ln_b']]

    hf = img_size // 32
    tokens = hf * hf                      # 16
    c_out = chans[-1][1]                  # 128

    # NOTE(v7x): with B==1 this grid has a single block and one TensorCore
    # idles; a spatial split of the stem stage would be needed for that case.
    in_specs = [pl.BlockSpec((None, img_size, img_size), lambda b: (b, 0, 0))]
    in_specs += [pl.BlockSpec(tuple(c.shape), lambda b: (0, 0)) for c in consts]

    return pl.pallas_call(
        functools.partial(_backbone_kernel, chans=chans),
        out_shape=jax.ShapeDtypeStruct((batch, tokens, c_out), jnp.float32),
        grid_spec=pltpu.PrefetchScalarGridSpec(
            num_scalar_prefetch=0,
            grid=(batch,),
            in_specs=in_specs,
            out_specs=pl.BlockSpec((None, tokens, c_out), lambda b: (b, 0, 0)),
        ),
        compiler_params=pltpu.CompilerParams(
            dimension_semantics=("parallel",)),
    )(image, *consts)


# ============================================================================
# Host-side constant construction (numpy, trace-time only)
# ============================================================================

def _hz_to_mel(f):  # Slaney mel scale (librosa / torchlibrosa default)
    f = np.asarray(f, np.float64)
    f_sp = 200.0 / 3.0
    min_log_hz = 1000.0
    min_log_mel = min_log_hz / f_sp
    logstep = np.log(6.4) / 27.0
    return np.where(f >= min_log_hz,
                    min_log_mel + np.log(np.maximum(f, min_log_hz)
                                         / min_log_hz) / logstep,
                    f / f_sp)


def _mel_to_hz(m):
    m = np.asarray(m, np.float64)
    f_sp = 200.0 / 3.0
    min_log_hz = 1000.0
    min_log_mel = min_log_hz / f_sp
    logstep = np.log(6.4) / 27.0
    return np.where(m >= min_log_mel,
                    min_log_hz * np.exp(logstep * (m - min_log_mel)),
                    f_sp * m)


def _slaney_mel_fb(sr, n_fft, n_mels, fmin, fmax, n_bins):
    """Slaney-normalized mel filterbank, (n_bins, n_mels).  The Nyquist bin is
    dropped (n_bins = n_fft//2) which is exact for fmax < sr/2."""
    fft_freqs = np.linspace(0.0, sr / 2.0, n_fft // 2 + 1)[:n_bins]
    hz_pts = _mel_to_hz(np.linspace(_hz_to_mel(fmin), _hz_to_mel(fmax),
                                    n_mels + 2))
    fdiff = np.diff(hz_pts)
    ramps = hz_pts[:, None] - fft_freqs[None, :]
    fb = np.zeros((n_bins, n_mels), np.float64)
    for m in range(n_mels):
        lower = -ramps[m] / fdiff[m]
        upper = ramps[m + 2] / fdiff[m + 1]
        fb[:, m] = np.maximum(0.0, np.minimum(lower, upper))
    enorm = 2.0 / (hz_pts[2:n_mels + 2] - hz_pts[:n_mels])
    return (fb * enorm[None, :]).astype(np.float32)


def _bilinear_matrix(in_size, out_size):
    """PyTorch F.interpolate bilinear, align_corners=False, as a dense matrix."""
    i = np.arange(out_size, dtype=np.float64)
    src = np.clip((i + 0.5) * (in_size / out_size) - 0.5, 0.0, in_size - 1)
    i0 = np.floor(src).astype(np.int64)
    i1 = np.minimum(i0 + 1, in_size - 1)
    w1 = (src - i0).astype(np.float32)
    w0 = 1.0 - w1
    m = np.zeros((out_size, in_size), dtype=np.float32)
    m[np.arange(out_size), i0] += w0
    m[np.arange(out_size), i1] += w1
    return m


def _sel_matrix(h_in):
    """0/1 row-selection matrix folding stride-2 + zero pad in H: (3*h/2, h)."""
    ho = h_in // 2
    s = np.zeros((3 * ho, h_in), np.float32)
    for dy in range(3):
        for i in range(ho):
            src = 2 * i + dy - 1
            if 0 <= src < h_in:
                s[dy * ho + i, src] = 1.0
    return s


def _stem_mix(stem_w, w_in, c_out):
    """Fold the stem's W taps + 1->c_out expansion into 3 mixing matrices,
    stacked to (3*w_in, (w_in//2)*c_out).  stem_w: (3, 3, c_out)."""
    wo = w_in // 2
    g = np.zeros((3, w_in, wo * c_out), np.float32)
    for dy in range(3):
        for dx in range(3):
            for j in range(wo):
                src = 2 * j + dx - 1
                if 0 <= src < w_in:
                    g[dy, src, j * c_out:(j + 1) * c_out] = stem_w[dy, dx]
    return g.reshape(3 * w_in, wo * c_out)


def init_params(key):
    cfg = dict(sr=8000, n_fft=256, hop=64, n_mels=64, fmin=50.0, fmax=3800.0,
               img=128, top_db=None)
    # TODO(synk): the original encoder's Spectrogram/LogmelFilterBank config
    # (sr, n_fft, hop, n_mels, fmin/fmax, top_db) is not available; PANNs-style
    # defaults are assumed (top_db=None).
    n_fft, n_mels, img = cfg['n_fft'], cfg['n_mels'], cfg['img']
    n_bins = n_fft // 2                      # Nyquist bin dropped (exact here)

    n = np.arange(n_fft)
    hann = 0.5 - 0.5 * np.cos(2.0 * np.pi * n / n_fft)     # periodic Hann
    kk = np.arange(n_bins)
    ang = 2.0 * np.pi * np.outer(n, kk) / n_fft
    dft_cos = (hann[:, None] * np.cos(ang)).astype(np.float32)
    dft_sin = (-hann[:, None] * np.sin(ang)).astype(np.float32)

    keys = jax.random.split(key, 10)
    ki = iter(keys)

    # Scaled-down EfficientNet-style backbone: stem(1->16, s2) then four
    # depthwise-separable stride-2 stages 16->32->48->96->128 (total stride 32).
    # TODO(synk): pretrained IMAGENET1K_V1 EfficientNet-B2 weights / full MBConv
    # (expansion, squeeze-excite, BatchNorm) are not reproduced; deterministic
    # synthetic weights with the same structural role are used instead.
    stem_c = 16
    chan_cfg = ((16, 32), (32, 48), (48, 96), (96, 128))
    stem_w = 0.1 * np.asarray(jax.random.normal(next(ki), (3, 3, stem_c)),
                              np.float32)
    h0 = img // 2

    params = {
        'cfg': cfg,
        'dft_cos': jnp.asarray(dft_cos, dtype=jnp.bfloat16),
        'dft_sin': jnp.asarray(dft_sin, dtype=jnp.bfloat16),
        'mel_fb': jnp.asarray(
            _slaney_mel_fb(cfg['sr'], n_fft, n_mels, cfg['fmin'], cfg['fmax'],
                           n_bins), dtype=jnp.bfloat16),
        's_stem': jnp.asarray(_sel_matrix(img), dtype=jnp.bfloat16),
        'g_stem': jnp.asarray(_stem_mix(stem_w, img, stem_c),
                              dtype=jnp.bfloat16),
        'b_stem': jnp.zeros((1, h0 * stem_c), jnp.float32),
        'blocks': [],
        'ln_g': jnp.ones((1, chan_cfg[-1][1]), jnp.float32),
        'ln_b': jnp.zeros((1, chan_cfg[-1][1]), jnp.float32),
    }
    h = h0
    for cin, cout in chan_cfg:
        params['blocks'].append(dict(
            s=jnp.asarray(_sel_matrix(h), dtype=jnp.bfloat16),
            dw_w=0.15 * jax.random.normal(next(ki), (9, cin), jnp.float32),
            dw_b=jnp.zeros((1, cin), jnp.float32),
            pw_w=(jax.random.normal(next(ki), (cin, cout), jnp.float32)
                  * np.float32(0.5 * np.sqrt(2.0 / cin))).astype(jnp.bfloat16),
            pw_b=jnp.zeros((1, cout), jnp.float32),
        ))
        h //= 2
    return params


# ============================================================================
# Forward pass
# ============================================================================

def efficientnet_b2_audio_encoder_forward(audio, lengths, params):
    # `lengths` is accepted but, like the PyTorch reference, the returned
    # frame_embs_lens is the constant H*W per item.
    del lengths
    b, t = audio.shape
    cfg = params['cfg']
    n_fft, hop, n_mels, img = cfg['n_fft'], cfg['hop'], cfg['n_mels'], cfg['img']

    # 1-4) spectrogram + log-mel + bilinear resize, fused into one kernel.
    #      Centered STFT (reflect pad), periodic Hann folded into DFT matrices.
    pad = n_fft // 2
    a = jnp.pad(audio.astype(jnp.float32), ((0, 0), (pad, pad)), mode='reflect')
    n_frames = 1 + t // hop
    idx = (hop * np.arange(n_frames)[:, None]
           + np.arange(n_fft)[None, :]).astype(np.int32)
    frames = a[:, idx].reshape(b * n_frames, n_fft).astype(jnp.bfloat16)

    wh = _bilinear_matrix(n_frames, img)                         # (128, Tf)
    wh_bd = jnp.asarray(np.kron(np.eye(b, dtype=np.float32), wh),
                        dtype=jnp.bfloat16)                      # (B*128, B*Tf)
    wwt = jnp.asarray(_bilinear_matrix(n_mels, img).T, dtype=jnp.bfloat16)

    image = pallas_frontend(frames, params['dft_cos'], params['dft_sin'],
                            params['mel_fb'], wh_bd, wwt, img, b,
                            top_db=cfg['top_db'])                # (B, 128, 128)

    # TODO(synk): SpecAugment masking and speed perturbation are stochastic
    # train-time augmentations; at inference they are identity, so no-op here.

    # 5-6) fully fused stride-32 backbone + LayerNorm (one kernel); output is
    # already (B, H*W, C) == view(B,C,H*W).transpose(1,2) of the reference.
    feats = pallas_backbone(image, params)                       # (B, 16, 128)

    lens = jnp.full((feats.shape[0],), feats.shape[1], dtype=jnp.int32)
    return {'frame_embs': feats, 'frame_embs_lens': lens}


# ============================================================================
# Demo
# ============================================================================

if __name__ == "__main__":
    key = jax.random.PRNGKey(0)
    k_audio, k_params = jax.random.split(key)
    B, T = 2, 512                                  # small synthetic audio batch
    audio = jax.random.normal(k_audio, (B, T), dtype=jnp.float32)
    lengths = [T, T - 32]
    params = init_params(k_params)

    out = efficientnet_b2_audio_encoder_forward(audio, lengths, params)
    jax.block_until_ready(out['frame_embs'])
    jax.block_until_ready(out['frame_embs_lens'])

    assert out['frame_embs'].shape == (B, 16, 128), out['frame_embs'].shape
    assert out['frame_embs_lens'].shape == (B,)
    assert bool(jnp.all(jnp.isfinite(out['frame_embs'])))
    print("KERNEL_OK")
</pallas_src>

<mosaic_0001>
module attributes {stable_mosaic.version = 11 : i64} {
  func.func @_frontend_kernel(%arg0: i32, %arg1: memref<18x256xbf16, #tpu.memory_space<vmem>>, %arg2: memref<256x128xbf16, #tpu.memory_space<vmem>>, %arg3: memref<256x128xbf16, #tpu.memory_space<vmem>>, %arg4: memref<128x64xbf16, #tpu.memory_space<vmem>>, %arg5: memref<128x18xbf16, #tpu.memory_space<vmem>>, %arg6: memref<64x128xbf16, #tpu.memory_space<vmem>>, %arg7: memref<1x128x128xf32, #tpu.memory_space<vmem>>) attributes {dimension_semantics = [#tpu.dimension_semantics<parallel>], iteration_bounds = array<i64: 2>, scalar_prefetch = 0 : i64, scratch_operands = 0 : i64, tpu.core_type = #tpu.core_type<tc>, window_params = [{pipeline_mode = #tpu.pipeline_mode<synchronous>, transform_indices = @transform_0, window_bounds = array<i64: 18, 256>}, {pipeline_mode = #tpu.pipeline_mode<synchronous>, transform_indices = @transform_1, window_bounds = array<i64: 256, 128>}, {pipeline_mode = #tpu.pipeline_mode<synchronous>, transform_indices = @transform_2, window_bounds = array<i64: 256, 128>}, {pipeline_mode = #tpu.pipeline_mode<synchronous>, transform_indices = @transform_3, window_bounds = array<i64: 128, 64>}, {transform_indices = @transform_4, window_bounds = array<i64: 128, 18>}, {pipeline_mode = #tpu.pipeline_mode<synchronous>, transform_indices = @transform_5, window_bounds = array<i64: 64, 128>}, {transform_indices = @transform_6, window_bounds = array<i64: 1, 128, 128>}]} {
    %c0 = arith.constant 0 : index
    %c0_0 = arith.constant 0 : index
    %0 = vector.load %arg1[%c0, %c0_0] : memref<18x256xbf16, #tpu.memory_space<vmem>>, vector<18x256xbf16>
    %c0_1 = arith.constant 0 : index
    %c0_2 = arith.constant 0 : index
    %1 = vector.load %arg2[%c0_1, %c0_2] : memref<256x128xbf16, #tpu.memory_space<vmem>>, vector<256x128xbf16>
    %cst = arith.constant dense<0.000000e+00> : vector<18x128xf32>
    %2 = tpu.matmul %0, %1, %cst {dimension_numbers = #tpu.dot_dimension_numbers<[1], [0], [0], [1], [0, 0, 1, 1], [], []>} : vector<18x256xbf16>, vector<256x128xbf16>, vector<18x128xf32> -> vector<18x128xf32>
    %c0_3 = arith.constant 0 : index
    %c0_4 = arith.constant 0 : index
    %3 = vector.load %arg3[%c0_3, %c0_4] : memref<256x128xbf16, #tpu.memory_space<vmem>>, vector<256x128xbf16>
    %cst_5 = arith.constant dense<0.000000e+00> : vector<18x128xf32>
    %4 = tpu.matmul %0, %3, %cst_5 {dimension_numbers = #tpu.dot_dimension_numbers<[1], [0], [0], [1], [0, 0, 1, 1], [], []>} : vector<18x256xbf16>, vector<256x128xbf16>, vector<18x128xf32> -> vector<18x128xf32>
    %5 = arith.mulf %2, %2 : vector<18x128xf32>
    %6 = arith.mulf %4, %4 : vector<18x128xf32>
    %7 = arith.addf %5, %6 : vector<18x128xf32>
    %8 = arith.truncf %7 : vector<18x128xf32> to vector<18x128xbf16>
    %c0_6 = arith.constant 0 : index
    %c0_7 = arith.constant 0 : index
    %9 = vector.load %arg4[%c0_6, %c0_7] : memref<128x64xbf16, #tpu.memory_space<vmem>>, vector<128x64xbf16>
    %cst_8 = arith.constant dense<0.000000e+00> : vector<18x64xf32>
    %10 = tpu.matmul %8, %9, %cst_8 {dimension_numbers = #tpu.dot_dimension_numbers<[1], [0], [0], [1], [0, 0, 1, 1], [], []>} : vector<18x128xbf16>, vector<128x64xbf16>, vector<18x64xf32> -> vector<18x64xf32>
    %cst_9 = arith.constant 1.000000e-10 : f32
    %11 = vector.broadcast %cst_9 : f32 to vector<18x64xf32>
    %12 = arith.maximumf %10, %11 : vector<18x64xf32>
    %13 = math.log %12 : vector<18x64xf32>
    %cst_10 = arith.constant 4.34294462 : f32
    %14 = vector.broadcast %cst_10 : f32 to vector<18x64xf32>
    %15 = arith.mulf %14, %13 : vector<18x64xf32>
    %c0_11 = arith.constant 0 : index
    %c0_12 = arith.constant 0 : index
    %16 = vector.load %arg5[%c0_11, %c0_12] : memref<128x18xbf16, #tpu.memory_space<vmem>>, vector<128x18xbf16>
    %17 = arith.truncf %15 : vector<18x64xf32> to vector<18x64xbf16>
    %cst_13 = arith.constant dense<0.000000e+00> : vector<128x64xf32>
    %18 = tpu.matmul %16, %17, %cst_13 {dimension_numbers = #tpu.dot_dimension_numbers<[1], [0], [0], [1], [0, 0, 1, 1], [], []>} : vector<128x18xbf16>, vector<18x64xbf16>, vector<128x64xf32> -> vector<128x64xf32>
    %19 = arith.truncf %18 : vector<128x64xf32> to vector<128x64xbf16>
    %c0_14 = arith.constant 0 : index
    %c0_15 = arith.constant 0 : index
    %20 = vector.load %arg6[%c0_14, %c0_15] : memref<64x128xbf16, #tpu.memory_space<vmem>>, vector<64x128xbf16>
    %cst_16 = arith.constant dense<0.000000e+00> : vector<128x128xf32>
    %21 = tpu.matmul %19, %20, %cst_16 {dimension_numbers = #tpu.dot_dimension_numbers<[1], [0], [0], [1], [0, 0, 1, 1], [], []>} : vector<128x64xbf16>, vector<64x128xbf16>, vector<128x128xf32> -> vector<128x128xf32>
    %c0_17 = arith.constant 0 : index
    %c0_18 = arith.constant 0 : index
    %c0_19 = arith.constant 0 : index
    %22 = vector.load %arg7[%c0_17, %c0_18, %c0_19] : memref<1x128x128xf32, #tpu.memory_space<vmem>>, vector<1x128x128xf32>
    %23 = vector.shape_cast %22 : vector<1x128x128xf32> to vector<128x128xf32>
    %24 = vector.shape_cast %21 : vector<128x128xf32> to vector<1x128x128xf32>
    tpu.vector_store %arg7[%c0_17, %c0_18, %c0_19], %24 {strides = array<i32>} : memref<1x128x128xf32, #tpu.memory_space<vmem>>, vector<1x128x128xf32>,
    return
  }
  func.func @transform_0(%arg0: i32) -> (i32, i32) {
    %c0_i32 = arith.constant 0 : i32
    %c0_i32_0 = arith.constant 0 : i32
    %c0_i32_1 = arith.constant 0 : i32
    return %c0_i32, %c0_i32_0 : i32, i32
  }
  func.func @transform_1(%arg0: i32) -> (i32, i32) {
    %c0_i32 = arith.constant 0 : i32
    %c0_i32_0 = arith.constant 0 : i32
    %c0_i32_1 = arith.constant 0 : i32
    return %c0_i32, %c0_i32_0 : i32, i32
  }
  func.func @transform_2(%arg0: i32) -> (i32, i32) {
    %c0_i32 = arith.constant 0 : i32
    %c0_i32_0 = arith.constant 0 : i32
    %c0_i32_1 = arith.constant 0 : i32
    return %c0_i32, %c0_i32_0 : i32, i32
  }
  func.func @transform_3(%arg0: i32) -> (i32, i32) {
    %c0_i32 = arith.constant 0 : i32
    %c0_i32_0 = arith.constant 0 : i32
    %c0_i32_1 = arith.constant 0 : i32
    return %c0_i32, %c0_i32_0 : i32, i32
  }
  func.func @transform_4(%arg0: i32) -> (i32, i32) {
    %c0_i32 = arith.constant 0 : i32
    %c0_i32_0 = arith.constant 0 : i32
    return %arg0, %c0_i32 : i32, i32
  }
  func.func @transform_5(%arg0: i32) -> (i32, i32) {
    %c0_i32 = arith.constant 0 : i32
    %c0_i32_0 = arith.constant 0 : i32
    %c0_i32_1 = arith.constant 0 : i32
    return %c0_i32, %c0_i32_0 : i32, i32
  }
  func.func @transform_6(%arg0: i32) -> (i32, i32, i32) {
    %c0_i32 = arith.constant 0 : i32
    %c0_i32_0 = arith.constant 0 : i32
    %c0_i32_1 = arith.constant 0 : i32
    return %arg0, %c0_i32, %c0_i32_0 : i32, i32, i32
  }
}

</mosaic_0001>

<llo_original>
// kernel: tpu_custom_call.1
$region0: #{tpu_custom_call.1}
  #allocation0 [shape = 'u32[]', space=smem, size = 0x4, offset = 0x4, fixed_abs, tag = 'smem constant byte address 0x4 - core index']
  #allocation1 [shape = 'u32[144,128]{1,0:T(1,128)}', space=vmem, size = 0x12000, scoped, tag = 'internal scratch']
  %s0 = inlined_call_operand.vmem [shape: bf16[18,256], index: 0, kind: input, shape index: {}]
  %s1 = inlined_call_operand.vmem [shape: bf16[256,128], index: 1, kind: input, shape index: {}]
  %s2 = inlined_call_operand.hbm [shape: bf16[256,128], index: 2, kind: input, shape index: {}]
  %s3 = inlined_call_operand.vmem [shape: bf16[128,64], index: 3, kind: input, shape index: {}]
  %s4 = inlined_call_operand.vmem [shape: bf16[256,18], index: 4, kind: input, shape index: {}]
  %s5 = inlined_call_operand.vmem [shape: bf16[64,128], index: 5, kind: input, shape index: {}]
  %s6 = inlined_call_operand.hbm [shape: f32[2,128,128], index: 6, kind: output, shape index: {}]
  %s7 = sld [smem:[#allocation0]]
  $region61: #{tpu_custom_call.1} parent=0
    _
  %s9 = ssub.s32 1, %s7
  %s10 = scalar_select 0, %s9, %s7
  $region1: #{tpu_custom_call.1} parent=0
    #allocation2 [shape = 'u8[65536]{0}', space=vmem, size = 0x10000, scoped, tag = 'input window, operand 2, single buffered']
    #allocation3 [shape = 's32[2]{0}', space=sflag, size = 0x8, scoped, tag = 'scoped memory for tpu_custom_call.1']
    #allocation4 [shape = 's32[2]{0}', space=sflag, size = 0x8, scoped, tag = 'scoped memory for tpu_custom_call.1']
    #allocation5 [shape = 'u8[131072]{0}', space=vmem, size = 0x20000, scoped, tag = 'output window, operand 0']
    %11 = vsyncpa [#allocation3], 0
    %12 = vsyncpa [#allocation4], 0
    %s13 = scalar_lea.sflag [#allocation4], 1
    %14 = vsyncpa %s13, 0
    loop: start=0, step=1, limit=4
    $region2: #{tpu_custom_call.1} parent=1 // loop_pre_header
      _
    $region3: #{tpu_custom_call.1} parent=1 // loop_header
      %s16 = sphi 0, %s20
      %p17 = scmp.ge.s32.totalorder %s16, 4
      %s24 = sphi 0, %s24
      %s26 = sphi 0, %s24
      %s27 = sphi 0, %s26
      %s41 = sphi 0, %s27
      %s45 = sphi 0, %s45
      %s47 = sphi 0, %s45
      %s48 = sphi 0, %s47
      %s62 = sphi 0, %s48
      %s66 = sphi 0, %s66
      %s68 = sphi 0, %s66
      %s69 = sphi 0, %s68
      %s83 = sphi 0, %s69
      %s87 = sphi 0, %s87
      %s89 = sphi 0, %s87
      %s90 = sphi 0, %s89
      %s104 = sphi 0, %s90
      %s110 = sphi 0, %s112
      %s113 = sphi 0, %s110
      %s114 = sphi 0, %s113
      %s130 = sphi 0, %s114
      %s134 = sphi 0, %s134
      %s136 = sphi 0, %s134
      %s137 = sphi 0, %s136
      %s151 = sphi 0, %s137
      %s157 = sphi 0, %s159
      %s160 = sphi 0, %s157
      %s161 = sphi 0, %s160
      %s177 = sphi 0, %s161
    $region4: #{tpu_custom_call.1} parent=1 // loop_header_branch
      %19 = sbr.rel (%p17) target = $region8
    $region5: #{tpu_custom_call.1} parent=1 // loop_body
      %s21 = ssub.s32 %s16, 1
      %s22 = ssub.s32 %s16, 2
      %s23 = sadd.s32 %s16, 1
      %s25 = sadd.s32 %s24, 1
      %p28 = scmp.eq.s32.totalorder %s16, 1
      %p29 = scmp.ne.s32.totalorder %s24, %s26
      %p30 = scmp.eq.s32.totalorder %s16, 0
      %p31 = por %p29, %p30
      %p32 = scmp.ne.s32.totalorder %s24, %s26
      %p33 = scmp.eq.s32.totalorder %s21, 1
      %p34 = por %p32, %p33
      %p35 = scmp.ne.s32.totalorder %s26, %s27
      %p36 = scmp.eq.s32.totalorder %s21, 0
      %p37 = por %p35, %p36
      %p38 = scmp.ne.s32.totalorder %s26, %s27
      %p39 = scmp.eq.s32.totalorder %s22, 1
      %p40 = por %p38, %p39
      %p42 = scmp.ne.s32.totalorder %s27, %s41
      %p43 = scmp.eq.s32.totalorder %s22, 0
      %p44 = por %p42, %p43
      %s46 = sadd.s32 %s45, 1
      %p49 = scmp.eq.s32.totalorder %s16, 1
      %p50 = scmp.ne.s32.totalorder %s45, %s47
      %p51 = scmp.eq.s32.totalorder %s16, 0
      %p52 = por %p50, %p51
      %p53 = scmp.ne.s32.totalorder %s45, %s47
      %p54 = scmp.eq.s32.totalorder %s21, 1
      %p55 = por %p53, %p54
      %p56 = scmp.ne.s32.totalorder %s47, %s48
      %p57 = scmp.eq.s32.totalorder %s21, 0
      %p58 = por %p56, %p57
      %p59 = scmp.ne.s32.totalorder %s47, %s48
      %p60 = scmp.eq.s32.totalorder %s22, 1
      %p61 = por %p59, %p60
      %p63 = scmp.ne.s32.totalorder %s48, %s62
      %p64 = scmp.eq.s32.totalorder %s22, 0
      %p65 = por %p63, %p64
      %s67 = sadd.s32 %s66, 1
      %p70 = scmp.eq.s32.totalorder %s16, 1
      %p71 = scmp.ne.s32.totalorder %s66, %s68
      %p72 = scmp.eq.s32.totalorder %s16, 0
      %p73 = por %p71, %p72
      %p74 = scmp.ne.s32.totalorder %s66, %s68
      %p75 = scmp.eq.s32.totalorder %s21, 1
      %p76 = por %p74, %p75
      %p77 = scmp.ne.s32.totalorder %s68, %s69
      %p78 = scmp.eq.s32.totalorder %s21, 0
      %p79 = por %p77, %p78
      %p80 = scmp.ne.s32.totalorder %s68, %s69
      %p81 = scmp.eq.s32.totalorder %s22, 1
      %p82 = por %p80, %p81
      %p84 = scmp.ne.s32.totalorder %s69, %s83
      %p85 = scmp.eq.s32.totalorder %s22, 0
      %p86 = por %p84, %p85
      %s88 = sadd.s32 %s87, 1
      %p91 = scmp.eq.s32.totalorder %s16, 1
      %p92 = scmp.ne.s32.totalorder %s87, %s89
      %p93 = scmp.eq.s32.totalorder %s16, 0
      %p94 = por %p92, %p93
      %p95 = scmp.ne.s32.totalorder %s87, %s89
      %p96 = scmp.eq.s32.totalorder %s21, 1
      %p97 = por %p95, %p96
      %p98 = scmp.ne.s32.totalorder %s89, %s90
      %p99 = scmp.eq.s32.totalorder %s21, 0
      %p100 = por %p98, %p99
      %p101 = scmp.ne.s32.totalorder %s89, %s90
      %p102 = scmp.eq.s32.totalorder %s22, 1
      %p103 = por %p101, %p102
      %p105 = scmp.ne.s32.totalorder %s90, %s104
      %p106 = scmp.eq.s32.totalorder %s22, 0
      %p107 = por %p105, %p106
      %s108 = ssub.s32 %s16, %s23
      %p109 = scmp.eq.s32.totalorder %s108, 0
      %s111 = sadd.s32 %s110, 1
      %s112 = scalar_select %p109, %s110, %s111
      %p115 = pneg %p109
      %p116 = scmp.eq.s32.totalorder %s16, 1
      %p117 = por %p115, %p116
      %p118 = scmp.ne.s32.totalorder %s110, %s113
      %p119 = scmp.eq.s32.totalorder %s16, 0
      %p120 = por %p118, %p119
      %p121 = scmp.ne.s32.totalorder %s110, %s113
      %p122 = scmp.eq.s32.totalorder %s21, 1
      %p123 = por %p121, %p122
      %p124 = scmp.ne.s32.totalorder %s113, %s114
      %p125 = scmp.eq.s32.totalorder %s21, 0
      %p126 = por %p124, %p125
      %p127 = scmp.ne.s32.totalorder %s113, %s114
      %p128 = scmp.eq.s32.totalorder %s22, 1
      %p129 = por %p127, %p128
      %p131 = scmp.ne.s32.totalorder %s114, %s130
      %p132 = scmp.eq.s32.totalorder %s22, 0
      %p133 = por %p131, %p132
      %s135 = sadd.s32 %s134, 1
      %p138 = scmp.eq.s32.totalorder %s16, 1
      %p139 = scmp.ne.s32.totalorder %s134, %s136
      %p140 = scmp.eq.s32.totalorder %s16, 0
      %p141 = por %p139, %p140
      %p142 = scmp.ne.s32.totalorder %s134, %s136
      %p143 = scmp.eq.s32.totalorder %s21, 1
      %p144 = por %p142, %p143
      %p145 = scmp.ne.s32.totalorder %s136, %s137
      %p146 = scmp.eq.s32.totalorder %s21, 0
      %p147 = por %p145, %p146
      %p148 = scmp.ne.s32.totalorder %s136, %s137
      %p149 = scmp.eq.s32.totalorder %s22, 1
      %p150 = por %p148, %p149
      %p152 = scmp.ne.s32.totalorder %s137, %s151
      %p153 = scmp.eq.s32.totalorder %s22, 0
      %p154 = por %p152, %p153
      %s155 = ssub.s32 %s16, %s23
      %p156 = scmp.eq.s32.totalorder %s155, 0
      %s158 = sadd.s32 %s157, 1
      %s159 = scalar_select %p156, %s157, %s158
      %p162 = pneg %p156
      %p163 = scmp.eq.s32.totalorder %s16, 1
      %p164 = por %p162, %p163
      %p165 = scmp.ne.s32.totalorder %s157, %s160
      %p166 = scmp.eq.s32.totalorder %s16, 0
      %p167 = por %p165, %p166
      %p168 = scmp.ne.s32.totalorder %s157, %s160
      %p169 = scmp.eq.s32.totalorder %s21, 1
      %p170 = por %p168, %p169
      %p171 = scmp.ne.s32.totalorder %s160, %s161
      %p172 = scmp.eq.s32.totalorder %s21, 0
      %p173 = por %p171, %p172
      %p174 = scmp.ne.s32.totalorder %s160, %s161
      %p175 = scmp.eq.s32.totalorder %s22, 1
      %p176 = por %p174, %p175
      %p178 = scmp.ne.s32.totalorder %s161, %s177
      %p179 = scmp.eq.s32.totalorder %s22, 0
      %p180 = por %p178, %p179
      %p181 = scmp.le.s32.totalorder 1, %s16
      %p182 = scmp.lt.s32.totalorder %s16, 3
      %p183 = pnand %p181, %p182
      %p184 = pneg %p183
      // Predicated region
      $region9: #{tpu_custom_call.1} parent=5 // pred_check
        _
      $region10: #{tpu_custom_call.1} parent=5 // pred_check_branch
        %186 = sbr.rel (%p183) target = $region12
      $region11: #{tpu_custom_call.1} parent=5 // pred_region
        %s187 = ssub.s32 %s16, 1
        // Predicated region
        $region13: #{tpu_custom_call.1} parent=11 // pred_check
          %p188 = pneg %p37
        $region14: #{tpu_custom_call.1} parent=11 // pred_check_branch
          %190 = sbr.rel (%p188) target = $region16
        $region15: #{tpu_custom_call.1} parent=11 // pred_region
          _
        $region16: #{tpu_custom_call.1} parent=11 // pred_fallthru
          _
        // Predicated region
        $region17: #{tpu_custom_call.1} parent=11 // pred_check
          %p191 = pneg %p58
        $region18: #{tpu_custom_call.1} parent=11 // pred_check_branch
          %193 = sbr.rel (%p191) target = $region20
        $region19: #{tpu_custom_call.1} parent=11 // pred_region
          _
        $region20: #{tpu_custom_call.1} parent=11 // pred_fallthru
          _
        // Predicated region
        $region21: #{tpu_custom_call.1} parent=11 // pred_check
          %p194 = pneg %p79
        $region22: #{tpu_custom_call.1} parent=11 // pred_check_branch
          %196 = sbr.rel (%p194) target = $region24
        $region23: #{tpu_custom_call.1} parent=11 // pred_region
          %s198 = ssub.s32 2048, 2048
          %199 = vsyncadd [#allocation3], %s198
          %s200 = sshll.u32 [#allocation2], 4
          %s201 = int_to_ptr.vmem [resolvable:$true] %s200
          %206 = dma.hbm_to_vmem [thread:$0]  %s2, 2048, %s201, [#allocation3], 64, 64, 4
        $region24: #{tpu_custom_call.1} parent=11 // pred_fallthru
          _
        // Predicated region
        $region25: #{tpu_custom_call.1} parent=11 // pred_check
          %p207 = pneg %p100
        $region26: #{tpu_custom_call.1} parent=11 // pred_check_branch
          %209 = sbr.rel (%p207) target = $region28
        $region27: #{tpu_custom_call.1} parent=11 // pred_region
          _
        $region28: #{tpu_custom_call.1} parent=11 // pred_fallthru
          _
        // Predicated region
        $region29: #{tpu_custom_call.1} parent=11 // pred_check
          %p210 = pneg %p147
        $region30: #{tpu_custom_call.1} parent=11 // pred_check_branch
          %212 = sbr.rel (%p210) target = $region32
        $region31: #{tpu_custom_call.1} parent=11 // pred_region
          _
        $region32: #{tpu_custom_call.1} parent=11 // pred_fallthru
          _
      $region12: #{tpu_custom_call.1} parent=5 // pred_fallthru
        _
      %p213 = scmp.lt.s32.totalorder %s16, 2
      // Predicated region
      $region33: #{tpu_custom_call.1} parent=5 // pred_check
        %p214 = pneg %p213
      $region34: #{tpu_custom_call.1} parent=5 // pred_check_branch
        %216 = sbr.rel (%p214) target = $region36
      $region35: #{tpu_custom_call.1} parent=5 // pred_region
        // Predicated region
        $region37: #{tpu_custom_call.1} parent=35 // pred_check
          %p217 = pneg %p120
        $region38: #{tpu_custom_call.1} parent=35 // pred_check_branch
          %219 = sbr.rel (%p217) target = $region40
        $region39: #{tpu_custom_call.1} parent=35 // pred_region
          %s220 = smul.u32 16, %s16
          %p221 = scmp.lt.s32.totalorder %s220, 31
          %s222 = scalar_select %p221, %s220, 31
          %s223 = smul.addr %s222, 4
          %s224 = scalar_lea.vmem %s4, %s223
          %s225 = smul.u32 16, %s16
        $region40: #{tpu_custom_call.1} parent=35 // pred_fallthru
          _
      $region36: #{tpu_custom_call.1} parent=5 // pred_fallthru
        _
      %p226 = scmp.le.s32.totalorder 1, %s16
      %p227 = scmp.lt.s32.totalorder %s16, 3
      %p228 = pnand %p226, %p227
      %p229 = pneg %p228
      // Predicated region
      $region41: #{tpu_custom_call.1} parent=5 // pred_check
        _
      $region42: #{tpu_custom_call.1} parent=5 // pred_check_branch
        %231 = sbr.rel (%p228) target = $region44
      $region43: #{tpu_custom_call.1} parent=5 // pred_region
        %s232 = ssub.s32 %s16, 1
        // Predicated region
        $region45: #{tpu_custom_call.1} parent=43 // pred_check
          %p233 = pneg %p79
        $region46: #{tpu_custom_call.1} parent=43 // pred_check_branch
          %235 = sbr.rel (%p233) target = $region48
        $region47: #{tpu_custom_call.1} parent=43 // pred_region
          %236 = dma.done [#allocation3], 2048
        $region48: #{tpu_custom_call.1} parent=43 // pred_fallthru
          _
        %p237 = pneg %p37
        %p238 = pneg %p34
        %p239 = pneg %p58
        %p240 = pneg %p55
        %p241 = pneg %p79
        %p242 = pneg %p76
        %p243 = pneg %p100
        %p244 = pneg %p97
        %s245 = smul.u32 16, %s21
        %p246 = scmp.lt.s32.totalorder %s245, 31
        %s247 = scalar_select %p246, %s245, 31
        %s248 = smul.addr %s247, 4
        %s249 = scalar_lea.vmem %s4, %s248
        %p250 = pneg %p126
        %p251 = pneg %p123
        %p252 = pneg %p147
        %p253 = pneg %p144
        %p254 = pneg %p173
        %p255 = pneg %p170
        %s256 = sand.u32 %s160, 1
        %s257 = scalar_lea.sflag [#allocation4], %s256
        %s258 = sand.u32 %s160, 1
        %s259 = smul.addr %s258, 128
        %s260 = scalar_lea.vmem [#allocation5], %s259
        %s261 = smul.u32 16, %s21
        %p262 = scmp.lt.s32.totalorder %s261, 31
        %s263 = scalar_select %p262, %s261, 31
        %s264 = smul.addr %s263, 4
        %s265 = scalar_lea.vmem %s4, %s264
        %s266 = smul.u32 16, %s21
        %v268 = vld [vmem:[%s0] sm:$0xff]
        %v269 = vld [vmem:[%s0 + $0x8] sm:$0xff]
        %v270 = vld [vmem:[%s0 + $0x10] sm:$0x11]
        %v271 = vld [vmem:[%s1] sm:$0xf]
        %v272 = vld [vmem:[%s1 + $0x4] sm:$0xf]
        %v273 = vld [vmem:[%s1 + $0x8] sm:$0xf]
        %v274 = vld [vmem:[%s1 + $0xc] sm:$0xf]
        %v275 = vld [vmem:[%s1 + $0x10] sm:$0xf]
        %v276 = vld [vmem:[%s1 + $0x14] sm:$0xf]
        %v277 = vld [vmem:[%s1 + $0x18] sm:$0xf]
        %v278 = vld [vmem:[%s1 + $0x1c] sm:$0xf]
        %v279 = vld [vmem:[%s1 + $0x20] sm:$0xf]
        %v280 = vld [vmem:[%s1 + $0x24] sm:$0xf]
        %v281 = vld [vmem:[%s1 + $0x28] sm:$0xf]
        %v282 = vld [vmem:[%s1 + $0x2c] sm:$0xf]
        %v283 = vld [vmem:[%s1 + $0x30] sm:$0xf]
        %v284 = vld [vmem:[%s1 + $0x34] sm:$0xf]
        %v285 = vld [vmem:[%s1 + $0x38] sm:$0xf]
        %v286 = vld [vmem:[%s1 + $0x3c] sm:$0xf]
        %v287 = vld [vmem:[%s1 + $0x40] sm:$0xf]
        %v288 = vld [vmem:[%s1 + $0x44] sm:$0xf]
        %v289 = vld [vmem:[%s1 + $0x48] sm:$0xf]
        %v290 = vld [vmem:[%s1 + $0x4c] sm:$0xf]
        %v291 = vld [vmem:[%s1 + $0x50] sm:$0xf]
        %v292 = vld [vmem:[%s1 + $0x54] sm:$0xf]
        %v293 = vld [vmem:[%s1 + $0x58] sm:$0xf]
        %v294 = vld [vmem:[%s1 + $0x5c] sm:$0xf]
        %v295 = vld [vmem:[%s1 + $0x60] sm:$0xf]
        %v296 = vld [vmem:[%s1 + $0x64] sm:$0xf]
        %v297 = vld [vmem:[%s1 + $0x68] sm:$0xf]
        %v298 = vld [vmem:[%s1 + $0x6c] sm:$0xf]
        %v299 = vld [vmem:[%s1 + $0x70] sm:$0xf]
        %v300 = vld [vmem:[%s1 + $0x74] sm:$0xf]
        %v301 = vld [vmem:[%s1 + $0x78] sm:$0xf]
        %v302 = vld [vmem:[%s1 + $0x7c] sm:$0xf]
        %v306 = vunpack.c.l.b16 %v268
        %v307 = vunpack.c.h.b16 %v268
        %v308 = vunpack.c.l.b16 %v269
        %v309 = vunpack.c.h.b16 %v269
        %v310 = vunpack.c.l.b16 %v270
        %v311 = vunpack.c.h.b16 %v270
        %v312 = vpack.c.b16 %v308, %v306
        %v313 = vpack.c.b16 %v309, %v307
        %v314 = vpack.c.b16 %v310, %v310
        %v315 = vpack.c.b16 %v311, %v311
        %v352 = vunpack.c.l.b16 %v271
        %v353 = vunpack.c.l.b16 %v272
        %v354 = vunpack.c.l.b16 %v273
        %v355 = vunpack.c.l.b16 %v274
        %v356 = vunpack.c.l.b16 %v275
        %v357 = vunpack.c.l.b16 %v276
        %v358 = vunpack.c.l.b16 %v277
        %v359 = vunpack.c.l.b16 %v278
        %v360 = vunpack.c.l.b16 %v279
        %v361 = vunpack.c.l.b16 %v280
        %v362 = vunpack.c.l.b16 %v281
        %v363 = vunpack.c.l.b16 %v282
        %v364 = vunpack.c.l.b16 %v283
        %v365 = vunpack.c.l.b16 %v284
        %v366 = vunpack.c.l.b16 %v285
        %v367 = vunpack.c.l.b16 %v286
        %v368 = vunpack.c.l.b16 %v287
        %v369 = vunpack.c.l.b16 %v288
        %v370 = vunpack.c.l.b16 %v289
        %v371 = vunpack.c.l.b16 %v290
        %v372 = vunpack.c.l.b16 %v291
        %v373 = vunpack.c.l.b16 %v292
        %v374 = vunpack.c.l.b16 %v293
        %v375 = vunpack.c.l.b16 %v294
        %v376 = vunpack.c.l.b16 %v295
        %v377 = vunpack.c.l.b16 %v296
        %v378 = vunpack.c.l.b16 %v297
        %v379 = vunpack.c.l.b16 %v298
        %v380 = vunpack.c.l.b16 %v299
        %v381 = vunpack.c.l.b16 %v300
        %v382 = vunpack.c.l.b16 %v301
        %v383 = vunpack.c.l.b16 %v302
        %v384 = vpack.c.b16 %v353, %v352
        %v385 = vpack.c.b16 %v355, %v354
        %v386 = vpack.c.b16 %v357, %v356
        %v387 = vpack.c.b16 %v359, %v358
        %v388 = vpack.c.b16 %v361, %v360
        %v389 = vpack.c.b16 %v363, %v362
        %v390 = vpack.c.b16 %v365, %v364
        %v391 = vpack.c.b16 %v367, %v366
        %v392 = vpack.c.b16 %v369, %v368
        %v393 = vpack.c.b16 %v371, %v370
        %v394 = vpack.c.b16 %v373, %v372
        %v395 = vpack.c.b16 %v375, %v374
        %v396 = vpack.c.b16 %v377, %v376
        %v397 = vpack.c.b16 %v379, %v378
        %v398 = vpack.c.b16 %v381, %v380
        %v399 = vpack.c.b16 %v383, %v382
        %416 = vmatprep.subr.bf16.mxu0 0
        %417 = vmatpush1.bf16.msra.mxu0 %v384
        %418 = vmatprep.subr.bf16.mxu0 0
        %419 = vmatpush1.bf16.msra.mxu0 %v385
        %420 = vmatprep.subr.bf16.mxu0 0
        %421 = vmatpush1.bf16.msra.mxu0 %v386
        %422 = vmatprep.subr.bf16.mxu0 0
        %423 = vmatpush1.bf16.msra.mxu0 %v387
        %424 = vmatprep.subr.bf16.mxu0 0
        %425 = vmatpush1.bf16.msra.mxu0 %v388
        %426 = vmatprep.subr.bf16.mxu0 0
        %427 = vmatpush1.bf16.msra.mxu0 %v389
        %428 = vmatprep.subr.bf16.mxu0 0
        %429 = vmatpush1.bf16.msra.mxu0 %v390
        %430 = vmatprep.subr.bf16.mxu0 0
        %431 = vmatpush1.bf16.msra.mxu0 %v391
        %432 = vmatprep.subr.bf16.mxu0 0
        %433 = vmatpush1.bf16.msra.mxu0 %v392
        %434 = vmatprep.subr.bf16.mxu0 0
        %435 = vmatpush1.bf16.msra.mxu0 %v393
        %436 = vmatprep.subr.bf16.mxu0 0
        %437 = vmatpush1.bf16.msra.mxu0 %v394
        %438 = vmatprep.subr.bf16.mxu0 0
        %439 = vmatpush1.bf16.msra.mxu0 %v395
        %440 = vmatprep.subr.bf16.mxu0 0
        %441 = vmatpush1.bf16.msra.mxu0 %v396
        %442 = vmatprep.subr.bf16.mxu0 0
        %443 = vmatpush1.bf16.msra.mxu0 %v397
        %444 = vmatprep.subr.bf16.mxu0 0
        %445 = vmatpush1.bf16.msra.mxu0 %v398
        %446 = vmatprep.subr.bf16.mxu0 0
        %447 = vmatpush1.bf16.msra.mxu0 %v399
        %448 = vmatprep.mubr.bf16.mxu0 %v313
        %449 = vmatmul.mubr.bf16.gmra.mrb[0].mxu0 %v312
        %v450 = vpop.f32.mrb[0].mxu0
        %v451 = vadd.f32 0.0, %v450
        %v452 = vpop.f32.mrb[0].mxu0
        %v453 = vpop.f32.mrb[0].mxu0
        %v454 = vadd.f32 0.0, %v453
        %v455 = vpop.f32.mrb[0].mxu0
        %456 = vmatprep.mubr.bf16.mxu0 %v315
        %457 = vmatmul.mubr.bf16.gmra.mrb[0].mxu0 %v314
        %v458 = vpop.f32.mrb[0].mxu0
        %v459 = vadd.f32 0.0, %v458
        %v460 = vpop.f32.mrb[0].mxu0
        %v461 = vpop.f32.mrb[0].mxu0
        %v462 = vpop.f32.mrb[0].mxu0
        %463 = vdwg.mxu0
        %v464 = vld [vmem:[#allocation2] sm:$0xf]
        %v465 = vld [vmem:[#allocation2 + $0x4] sm:$0xf]
        %v466 = vld [vmem:[#allocation2 + $0x8] sm:$0xf]
        %v467 = vld [vmem:[#allocation2 + $0xc] sm:$0xf]
        %v468 = vld [vmem:[#allocation2 + $0x10] sm:$0xf]
        %v469 = vld [vmem:[#allocation2 + $0x14] sm:$0xf]
        %v470 = vld [vmem:[#allocation2 + $0x18] sm:$0xf]
        %v471 = vld [vmem:[#allocation2 + $0x1c] sm:$0xf]
        %v472 = vld [vmem:[#allocation2 + $0x20] sm:$0xf]
        %v473 = vld [vmem:[#allocation2 + $0x24] sm:$0xf]
        %v474 = vld [vmem:[#allocation2 + $0x28] sm:$0xf]
        %v475 = vld [vmem:[#allocation2 + $0x2c] sm:$0xf]
        %v476 = vld [vmem:[#allocation2 + $0x30] sm:$0xf]
        %v477 = vld [vmem:[#allocation2 + $0x34] sm:$0xf]
        %v478 = vld [vmem:[#allocation2 + $0x38] sm:$0xf]
        %v479 = vld [vmem:[#allocation2 + $0x3c] sm:$0xf]
        %v480 = vld [vmem:[#allocation2 + $0x40] sm:$0xf]
        %v481 = vld [vmem:[#allocation2 + $0x44] sm:$0xf]
        %v482 = vld [vmem:[#allocation2 + $0x48] sm:$0xf]
        %v483 = vld [vmem:[#allocation2 + $0x4c] sm:$0xf]
        %v484 = vld [vmem:[#allocation2 + $0x50] sm:$0xf]
        %v485 = vld [vmem:[#allocation2 + $0x54] sm:$0xf]
        %v486 = vld [vmem:[#allocation2 + $0x58] sm:$0xf]
        %v487 = vld [vmem:[#allocation2 + $0x5c] sm:$0xf]
        %v488 = vld [vmem:[#allocation2 + $0x60] sm:$0xf]
        %v489 = vld [vmem:[#allocation2 + $0x64] sm:$0xf]
        %v490 = vld [vmem:[#allocation2 + $0x68] sm:$0xf]
        %v491 = vld [vmem:[#allocation2 + $0x6c] sm:$0xf]
        %v492 = vld [vmem:[#allocation2 + $0x70] sm:$0xf]
        %v493 = vld [vmem:[#allocation2 + $0x74] sm:$0xf]
        %v494 = vld [vmem:[#allocation2 + $0x78] sm:$0xf]
        %v495 = vld [vmem:[#allocation2 + $0x7c] sm:$0xf]
        %v528 = vunpack.c.l.b16 %v464
        %v529 = vunpack.c.l.b16 %v465
        %v530 = vunpack.c.l.b16 %v466
        %v531 = vunpack.c.l.b16 %v467
        %v532 = vunpack.c.l.b16 %v468
        %v533 = vunpack.c.l.b16 %v469
        %v534 = vunpack.c.l.b16 %v470
        %v535 = vunpack.c.l.b16 %v471
        %v536 = vunpack.c.l.b16 %v472
        %v537 = vunpack.c.l.b16 %v473
        %v538 = vunpack.c.l.b16 %v474
        %v539 = vunpack.c.l.b16 %v475
        %v540 = vunpack.c.l.b16 %v476
        %v541 = vunpack.c.l.b16 %v477
        %v542 = vunpack.c.l.b16 %v478
        %v543 = vunpack.c.l.b16 %v479
        %v544 = vunpack.c.l.b16 %v480
        %v545 = vunpack.c.l.b16 %v481
        %v546 = vunpack.c.l.b16 %v482
        %v547 = vunpack.c.l.b16 %v483
        %v548 = vunpack.c.l.b16 %v484
        %v549 = vunpack.c.l.b16 %v485
        %v550 = vunpack.c.l.b16 %v486
        %v551 = vunpack.c.l.b16 %v487
        %v552 = vunpack.c.l.b16 %v488
        %v553 = vunpack.c.l.b16 %v489
        %v554 = vunpack.c.l.b16 %v490
        %v555 = vunpack.c.l.b16 %v491
        %v556 = vunpack.c.l.b16 %v492
        %v557 = vunpack.c.l.b16 %v493
        %v558 = vunpack.c.l.b16 %v494
        %v559 = vunpack.c.l.b16 %v495
        %v560 = vpack.c.b16 %v529, %v528
        %v561 = vpack.c.b16 %v531, %v530
        %v562 = vpack.c.b16 %v533, %v532
        %v563 = vpack.c.b16 %v535, %v534
        %v564 = vpack.c.b16 %v537, %v536
        %v565 = vpack.c.b16 %v539, %v538
        %v566 = vpack.c.b16 %v541, %v540
        %v567 = vpack.c.b16 %v543, %v542
        %v568 = vpack.c.b16 %v545, %v544
        %v569 = vpack.c.b16 %v547, %v546
        %v570 = vpack.c.b16 %v549, %v548
        %v571 = vpack.c.b16 %v551, %v550
        %v572 = vpack.c.b16 %v553, %v552
        %v573 = vpack.c.b16 %v555, %v554
        %v574 = vpack.c.b16 %v557, %v556
        %v575 = vpack.c.b16 %v559, %v558
        %592 = vmatprep.subr.bf16.mxu0 0
        %593 = vmatpush1.bf16.msra.mxu0 %v560
        %594 = vmatprep.subr.bf16.mxu0 0
        %595 = vmatpush1.bf16.msra.mxu0 %v561
        %596 = vmatprep.subr.bf16.mxu0 0
        %597 = vmatpush1.bf16.msra.mxu0 %v562
        %598 = vmatprep.subr.bf16.mxu0 0
        %599 = vmatpush1.bf16.msra.mxu0 %v563
        %600 = vmatprep.subr.bf16.mxu0 0
        %601 = vmatpush1.bf16.msra.mxu0 %v564
        %602 = vmatprep.subr.bf16.mxu0 0
        %603 = vmatpush1.bf16.msra.mxu0 %v565
        %604 = vmatprep.subr.bf16.mxu0 0
        %605 = vmatpush1.bf16.msra.mxu0 %v566
        %606 = vmatprep.subr.bf16.mxu0 0
        %607 = vmatpush1.bf16.msra.mxu0 %v567
        %608 = vmatprep.subr.bf16.mxu0 0
        %609 = vmatpush1.bf16.msra.mxu0 %v568
        %610 = vmatprep.subr.bf16.mxu0 0
        %611 = vmatpush1.bf16.msra.mxu0 %v569
        %612 = vmatprep.subr.bf16.mxu0 0
        %613 = vmatpush1.bf16.msra.mxu0 %v570
        %614 = vmatprep.subr.bf16.mxu0 0
        %615 = vmatpush1.bf16.msra.mxu0 %v571
        %616 = vmatprep.subr.bf16.mxu0 0
        %617 = vmatpush1.bf16.msra.mxu0 %v572
        %618 = vmatprep.subr.bf16.mxu0 0
        %619 = vmatpush1.bf16.msra.mxu0 %v573
        %620 = vmatprep.subr.bf16.mxu0 0
        %621 = vmatpush1.bf16.msra.mxu0 %v574
        %622 = vmatprep.subr.bf16.mxu0 0
        %623 = vmatpush1.bf16.msra.mxu0 %v575
        %624 = vmatprep.mubr.bf16.mxu0 %v313
        %625 = vmatmul.mubr.bf16.gmra.mrb[0].mxu0 %v312
        %v626 = vpop.f32.mrb[0].mxu0
        %v627 = vadd.f32 0.0, %v626
        %v628 = vpop.f32.mrb[0].mxu0
        %v629 = vpop.f32.mrb[0].mxu0
        %v630 = vadd.f32 0.0, %v629
        %v631 = vpop.f32.mrb[0].mxu0
        %632 = vmatprep.mubr.bf16.mxu0 %v315
        %633 = vmatmul.mubr.bf16.gmra.mrb[0].mxu0 %v314
        %v634 = vpop.f32.mrb[0].mxu0
        %v635 = vadd.f32 0.0, %v634
        %v636 = vpop.f32.mrb[0].mxu0
        %v637 = vpop.f32.mrb[0].mxu0
        %v638 = vpop.f32.mrb[0].mxu0
        %639 = vdwg.mxu0
        %v640 = vmul.f32 %v451, %v451
        %v641 = vmul.f32 %v454, %v454
        %v642 = vmul.f32 %v459, %v459
        %v643 = vmul.f32 %v627, %v627
        %v644 = vmul.f32 %v630, %v630
        %v645 = vmul.f32 %v635, %v635
        %v646 = vadd.f32 %v640, %v643
        %v647 = vadd.f32 %v641, %v644
        %v648 = vadd.f32 %v642, %v645
        %v649 = vpack.c.bf16 %v647, %v646
        %v650 = vpack.c.bf16 %v648, %v648
        %v651 = vld [vmem:[%s3] sm:$0xf]
        %v652 = vld [vmem:[%s3 + $0x4] sm:$0xf]
        %v653 = vld [vmem:[%s3 + $0x8] sm:$0xf]
        %v654 = vld [vmem:[%s3 + $0xc] sm:$0xf]
        %v655 = vld [vmem:[%s3 + $0x10] sm:$0xf]
        %v656 = vld [vmem:[%s3 + $0x14] sm:$0xf]
        %v657 = vld [vmem:[%s3 + $0x18] sm:$0xf]
        %v658 = vld [vmem:[%s3 + $0x1c] sm:$0xf]
        %v659 = vld [vmem:[%s3 + $0x20] sm:$0xf]
        %v660 = vld [vmem:[%s3 + $0x24] sm:$0xf]
        %v661 = vld [vmem:[%s3 + $0x28] sm:$0xf]
        %v662 = vld [vmem:[%s3 + $0x2c] sm:$0xf]
        %v663 = vld [vmem:[%s3 + $0x30] sm:$0xf]
        %v664 = vld [vmem:[%s3 + $0x34] sm:$0xf]
        %v665 = vld [vmem:[%s3 + $0x38] sm:$0xf]
        %v666 = vld [vmem:[%s3 + $0x3c] sm:$0xf]
        %v683 = vunpack.c.l.b16 %v651
        %v684 = vunpack.c.l.b16 %v652
        %v685 = vunpack.c.l.b16 %v653
        %v686 = vunpack.c.l.b16 %v654
        %v687 = vunpack.c.l.b16 %v655
        %v688 = vunpack.c.l.b16 %v656
        %v689 = vunpack.c.l.b16 %v657
        %v690 = vunpack.c.l.b16 %v658
        %v691 = vunpack.c.l.b16 %v659
        %v692 = vunpack.c.l.b16 %v660
        %v693 = vunpack.c.l.b16 %v661
        %v694 = vunpack.c.l.b16 %v662
        %v695 = vunpack.c.l.b16 %v663
        %v696 = vunpack.c.l.b16 %v664
        %v697 = vunpack.c.l.b16 %v665
        %v698 = vunpack.c.l.b16 %v666
        %v699 = vpack.c.b16 %v684, %v683
        %v700 = vpack.c.b16 %v686, %v685
        %v701 = vpack.c.b16 %v688, %v687
        %v702 = vpack.c.b16 %v690, %v689
        %v703 = vpack.c.b16 %v692, %v691
        %v704 = vpack.c.b16 %v694, %v693
        %v705 = vpack.c.b16 %v696, %v695
        %v706 = vpack.c.b16 %v698, %v697
        %715 = vmatprep.subr.bf16.mxu0 0
        %716 = vmatpush1.bf16.msra.mxu0 %v699
        %717 = vmatprep.subr.bf16.mxu0 0
        %718 = vmatpush1.bf16.msra.mxu0 %v700
        %719 = vmatprep.subr.bf16.mxu0 0
        %720 = vmatpush1.bf16.msra.mxu0 %v701
        %721 = vmatprep.subr.bf16.mxu0 0
        %722 = vmatpush1.bf16.msra.mxu0 %v702
        %723 = vmatprep.subr.bf16.mxu0 0
        %724 = vmatpush1.bf16.msra.mxu0 %v703
        %725 = vmatprep.subr.bf16.mxu0 0
        %726 = vmatpush1.bf16.msra.mxu0 %v704
        %727 = vmatprep.subr.bf16.mxu0 0
        %728 = vmatpush1.bf16.msra.mxu0 %v705
        %729 = vmatprep.subr.bf16.mxu0 0
        %730 = vmatpush1.bf16.msra.mxu0 %v706
        %731 = vmatprep.subr.bf16.mxu0 0
        %732 = vmatpush1.bf16.msra.mxu0 0
        %733 = vmatprep.subr.bf16.mxu0 0
        %734 = vmatpush1.bf16.msra.mxu0 0
        %735 = vmatprep.subr.bf16.mxu0 0
        %736 = vmatpush1.bf16.msra.mxu0 0
        %737 = vmatprep.subr.bf16.mxu0 0
        %738 = vmatpush1.bf16.msra.mxu0 0
        %739 = vmatprep.subr.bf16.mxu0 0
        %740 = vmatpush1.bf16.msra.mxu0 0
        %741 = vmatprep.subr.bf16.mxu0 0
        %742 = vmatpush1.bf16.msra.mxu0 0
        %743 = vmatprep.subr.bf16.mxu0 0
        %744 = vmatpush1.bf16.msra.mxu0 0
        %745 = vmatprep.subr.bf16.mxu0 0
        %746 = vmatpush1.bf16.msra.mxu0 0
        %747 = vmatprep.mubr.bf16.mxu0 0
        %748 = vmatmul.mubr.bf16.gmra.mrb[0].mxu0 %v649
        %v749 = vpop.f32.mrb[0].mxu0
        %v750 = vadd.f32 0.0, %v749
        %v751 = vpop.f32.mrb[0].mxu0
        %v752 = vpop.f32.mrb[0].mxu0
        %v753 = vadd.f32 0.0, %v752
        %v754 = vpop.f32.mrb[0].mxu0
        %755 = vmatprep.mubr.bf16.mxu0 0
        %756 = vmatmul.mubr.bf16.gmra.mrb[0].mxu0 %v650
        %v757 = vpop.f32.mrb[0].mxu0
        %v758 = vadd.f32 0.0, %v757
        %v759 = vpop.f32.mrb[0].mxu0
        %v760 = vpop.f32.mrb[0].mxu0
        %v761 = vpop.f32.mrb[0].mxu0
        %762 = vdwg.mxu0
        %v763 = vmax.f32 %v750, 1e-10
        %v764 = vmax.f32 %v753, 1e-10
        %v765 = vmax.f32 %v758, 1e-10
        %v766 = vlog2.pop %v763
        %v767 = vmul.f32 %v766, 0.6931472
        %v768 = vlog2.pop %v764
        %v769 = vmul.f32 %v768, 0.6931472
        %v770 = vlog2.pop %v765
        %v771 = vmul.f32 %v770, 0.6931472
        %v772 = vmul.f32 %v767, 4.3429446
        %v773 = vmul.f32 %v769, 4.3429446
        %v774 = vmul.f32 %v771, 4.3429446
        %v775 = vld [vmem:[%s265] sm:$0xf]
        %v776 = vld [vmem:[%s265 + $0x4] sm:$0xf]
        %v777 = vld [vmem:[%s265 + $0x8] sm:$0xf]
        %v778 = vld [vmem:[%s265 + $0xc] sm:$0xf]
        %v779 = vld [vmem:[%s265 + $0x10] sm:$0xf]
        %v780 = vld [vmem:[%s265 + $0x14] sm:$0xf]
        %v781 = vld [vmem:[%s265 + $0x18] sm:$0xf]
        %v782 = vld [vmem:[%s265 + $0x1c] sm:$0xf]
        %v783 = vld [vmem:[%s265 + $0x20] sm:$0xf]
        %v784 = vld [vmem:[%s265 + $0x24] sm:$0xf]
        %v785 = vld [vmem:[%s265 + $0x28] sm:$0xf]
        %v786 = vld [vmem:[%s265 + $0x2c] sm:$0xf]
        %v787 = vld [vmem:[%s265 + $0x30] sm:$0xf]
        %v788 = vld [vmem:[%s265 + $0x34] sm:$0xf]
        %v789 = vld [vmem:[%s265 + $0x38] sm:$0xf]
        %v790 = vld [vmem:[%s265 + $0x3c] sm:$0xf]
        %v791 = vpack.c.bf16 %v773, %v772
        %v792 = vpack.c.bf16 %v774, %v774
        %v809 = vunpack.c.l.b16 %v775
        %v810 = vunpack.c.l.b16 %v776
        %v811 = vunpack.c.l.b16 %v777
        %v812 = vunpack.c.l.b16 %v778
        %v813 = vunpack.c.l.b16 %v779
        %v814 = vunpack.c.l.b16 %v780
        %v815 = vunpack.c.l.b16 %v781
        %v816 = vunpack.c.l.b16 %v782
        %v817 = vunpack.c.l.b16 %v783
        %v818 = vunpack.c.l.b16 %v784
        %v819 = vunpack.c.l.b16 %v785
        %v820 = vunpack.c.l.b16 %v786
        %v821 = vunpack.c.l.b16 %v787
        %v822 = vunpack.c.l.b16 %v788
        %v823 = vunpack.c.l.b16 %v789
        %v824 = vunpack.c.l.b16 %v790
        %v825 = vpack.c.b16 %v810, %v809
        %v826 = vpack.c.b16 %v812, %v811
        %v827 = vpack.c.b16 %v814, %v813
        %v828 = vpack.c.b16 %v816, %v815
        %v829 = vpack.c.b16 %v818, %v817
        %v830 = vpack.c.b16 %v820, %v819
        %v831 = vpack.c.b16 %v822, %v821
        %v832 = vpack.c.b16 %v824, %v823
        %vm833 = vcmask 146432
        %v835 = vsel %vm833, %v825, 0
        %v838 = vsel %vm833, %v826, 0
        %v841 = vsel %vm833, %v827, 0
        %v844 = vsel %vm833, %v828, 0
        %v847 = vsel %vm833, %v829, 0
        %v850 = vsel %vm833, %v830, 0
        %v853 = vsel %vm833, %v831, 0
        %v856 = vsel %vm833, %v832, 0
        %vm858 = vcmask 1040384
        %v860 = vsel %vm858, %v792, 0
        %862 = vmatprep.subr.bf16.mxu0 0
        %863 = vmatpush1.bf16.msra.mxu0 %v791
        %864 = vmatprep.subr.bf16.mxu0 0
        %865 = vmatpush1.bf16.msra.mxu0 %v860
        %866 = vmatprep.subr.bf16.mxu0 0
        %867 = vmatpush1.bf16.msra.mxu0 0
        %868 = vmatprep.subr.bf16.mxu0 0
        %869 = vmatpush1.bf16.msra.mxu0 0
        %870 = vmatprep.subr.bf16.mxu0 0
        %871 = vmatpush1.bf16.msra.mxu0 0
        %872 = vmatprep.subr.bf16.mxu0 0
        %873 = vmatpush1.bf16.msra.mxu0 0
        %874 = vmatprep.subr.bf16.mxu0 0
        %875 = vmatpush1.bf16.msra.mxu0 0
        %876 = vmatprep.subr.bf16.mxu0 0
        %877 = vmatpush1.bf16.msra.mxu0 0
        %878 = vmatprep.subr.bf16.mxu0 0
        %879 = vmatpush1.bf16.msra.mxu0 0
        %880 = vmatprep.subr.bf16.mxu0 0
        %881 = vmatpush1.bf16.msra.mxu0 0
        %882 = vmatprep.subr.bf16.mxu0 0
        %883 = vmatpush1.bf16.msra.mxu0 0
        %884 = vmatprep.subr.bf16.mxu0 0
        %885 = vmatpush1.bf16.msra.mxu0 0
        %886 = vmatprep.subr.bf16.mxu0 0
        %887 = vmatpush1.bf16.msra.mxu0 0
        %888 = vmatprep.subr.bf16.mxu0 0
        %889 = vmatpush1.bf16.msra.mxu0 0
        %890 = vmatprep.subr.bf16.mxu0 0
        %891 = vmatpush1.bf16.msra.mxu0 0
        %892 = vmatprep.subr.bf16.mxu0 0
        %893 = vmatpush1.bf16.msra.mxu0 0
        %894 = vmatprep.mubr.bf16.mxu0 0
        %895 = vmatmul.mubr.bf16.gmra.mrb[0].mxu0 %v835
        %v896 = vpop.f32.mrb[0].mxu0
        %v897 = vadd.f32 0.0, %v896
        %v898 = vpop.f32.mrb[0].mxu0
        %v899 = vpop.f32.mrb[0].mxu0
        %v900 = vadd.f32 0.0, %v899
        %v901 = vpop.f32.mrb[0].mxu0
        %902 = vmatprep.mubr.bf16.mxu0 0
        %903 = vmatmul.mubr.bf16.gmra.mrb[0].mxu0 %v838
        %v904 = vpop.f32.mrb[0].mxu0
        %v905 = vadd.f32 0.0, %v904
        %v906 = vpop.f32.mrb[0].mxu0
        %v907 = vpop.f32.mrb[0].mxu0
        %v908 = vadd.f32 0.0, %v907
        %v909 = vpop.f32.mrb[0].mxu0
        %910 = vmatprep.mubr.bf16.mxu0 0
        %911 = vmatmul.mubr.bf16.gmra.mrb[0].mxu0 %v841
        %v912 = vpop.f32.mrb[0].mxu0
        %v913 = vadd.f32 0.0, %v912
        %v914 = vpop.f32.mrb[0].mxu0
        %v915 = vpop.f32.mrb[0].mxu0
        %v916 = vadd.f32 0.0, %v915
        %v917 = vpop.f32.mrb[0].mxu0
        %918 = vmatprep.mubr.bf16.mxu0 0
        %919 = vmatmul.mubr.bf16.gmra.mrb[0].mxu0 %v844
        %v920 = vpop.f32.mrb[0].mxu0
        %v921 = vadd.f32 0.0, %v920
        %v922 = vpop.f32.mrb[0].mxu0
        %v923 = vpop.f32.mrb[0].mxu0
        %v924 = vadd.f32 0.0, %v923
        %v925 = vpop.f32.mrb[0].mxu0
        %926 = vmatprep.mubr.bf16.mxu0 0
        %927 = vmatmul.mubr.bf16.gmra.mrb[0].mxu0 %v847
        %v928 = vpop.f32.mrb[0].mxu0
        %v929 = vadd.f32 0.0, %v928
        %v930 = vpop.f32.mrb[0].mxu0
        %v931 = vpop.f32.mrb[0].mxu0
        %v932 = vadd.f32 0.0, %v931
        %v933 = vpop.f32.mrb[0].mxu0
        %934 = vmatprep.mubr.bf16.mxu0 0
        %935 = vmatmul.mubr.bf16.gmra.mrb[0].mxu0 %v850
        %v936 = vpop.f32.mrb[0].mxu0
        %v937 = vadd.f32 0.0, %v936
        %v938 = vpop.f32.mrb[0].mxu0
        %v939 = vpop.f32.mrb[0].mxu0
        %v940 = vadd.f32 0.0, %v939
        %v941 = vpop.f32.mrb[0].mxu0
        %942 = vmatprep.mubr.bf16.mxu0 0
        %943 = vmatmul.mubr.bf16.gmra.mrb[0].mxu0 %v853
        %v944 = vpop.f32.mrb[0].mxu0
        %v945 = vadd.f32 0.0, %v944
        %v946 = vpop.f32.mrb[0].mxu0
        %v947 = vpop.f32.mrb[0].mxu0
        %v948 = vadd.f32 0.0, %v947
        %v949 = vpop.f32.mrb[0].mxu0
        %950 = vmatprep.mubr.bf16.mxu0 0
        %951 = vmatmul.mubr.bf16.gmra.mrb[0].mxu0 %v856
        %v952 = vpop.f32.mrb[0].mxu0
        %v953 = vadd.f32 0.0, %v952
        %v954 = vpop.f32.mrb[0].mxu0
        %v955 = vpop.f32.mrb[0].mxu0
        %v956 = vadd.f32 0.0, %v955
        %v957 = vpop.f32.mrb[0].mxu0
        %958 = vdwg.mxu0
        %v959 = vpack.c.bf16 %v900, %v897
        %v960 = vpack.c.bf16 %v908, %v905
        %v961 = vpack.c.bf16 %v916, %v913
        %v962 = vpack.c.bf16 %v924, %v921
        %v963 = vpack.c.bf16 %v932, %v929
        %v964 = vpack.c.bf16 %v940, %v937
        %v965 = vpack.c.bf16 %v948, %v945
        %v966 = vpack.c.bf16 %v956, %v953
        %v967 = vld [vmem:[%s5] sm:$0xf]
        %v968 = vld [vmem:[%s5 + $0x4] sm:$0xf]
        %v969 = vld [vmem:[%s5 + $0x8] sm:$0xf]
        %v970 = vld [vmem:[%s5 + $0xc] sm:$0xf]
        %v971 = vld [vmem:[%s5 + $0x10] sm:$0xf]
        %v972 = vld [vmem:[%s5 + $0x14] sm:$0xf]
        %v973 = vld [vmem:[%s5 + $0x18] sm:$0xf]
        %v974 = vld [vmem:[%s5 + $0x1c] sm:$0xf]
        %v983 = vunpack.c.l.b16 %v967
        %v984 = vunpack.c.l.b16 %v968
        %v985 = vunpack.c.l.b16 %v969
        %v986 = vunpack.c.l.b16 %v970
        %v987 = vunpack.c.l.b16 %v971
        %v988 = vunpack.c.l.b16 %v972
        %v989 = vunpack.c.l.b16 %v973
        %v990 = vunpack.c.l.b16 %v974
        %v991 = vpack.c.b16 %v984, %v983
        %v992 = vpack.c.b16 %v986, %v985
        %v993 = vpack.c.b16 %v988, %v987
        %v994 = vpack.c.b16 %v990, %v989
        %vm999 = vcmask 523264
        %v1001 = vsel %vm999, %v959, 0
        %v1004 = vsel %vm999, %v960, 0
        %v1007 = vsel %vm999, %v961, 0
        %v1010 = vsel %vm999, %v962, 0
        %v1013 = vsel %vm999, %v963, 0
        %v1016 = vsel %vm999, %v964, 0
        %v1019 = vsel %vm999, %v965, 0
        %v1022 = vsel %vm999, %v966, 0
        %1024 = vmatprep.subr.bf16.mxu0 0
        %1025 = vmatpush1.bf16.msra.mxu0 %v991
        %1026 = vmatprep.subr.bf16.mxu0 0
        %1027 = vmatpush1.bf16.msra.mxu0 %v992
        %1028 = vmatprep.subr.bf16.mxu0 0
        %1029 = vmatpush1.bf16.msra.mxu0 %v993
        %1030 = vmatprep.subr.bf16.mxu0 0
        %1031 = vmatpush1.bf16.msra.mxu0 %v994
        %1032 = vmatprep.subr.bf16.mxu0 0
        %1033 = vmatpush1.bf16.msra.mxu0 0
        %1034 = vmatprep.subr.bf16.mxu0 0
        %1035 = vmatpush1.bf16.msra.mxu0 0
        %1036 = vmatprep.subr.bf16.mxu0 0
        %1037 = vmatpush1.bf16.msra.mxu0 0
        %1038 = vmatprep.subr.bf16.mxu0 0
        %1039 = vmatpush1.bf16.msra.mxu0 0
        %1040 = vmatprep.subr.bf16.mxu0 0
        %1041 = vmatpush1.bf16.msra.mxu0 0
        %1042 = vmatprep.subr.bf16.mxu0 0
        %1043 = vmatpush1.bf16.msra.mxu0 0
        %1044 = vmatprep.subr.bf16.mxu0 0
        %1045 = vmatpush1.bf16.msra.mxu0 0
        %1046 = vmatprep.subr.bf16.mxu0 0
        %1047 = vmatpush1.bf16.msra.mxu0 0
        %1048 = vmatprep.subr.bf16.mxu0 0
        %1049 = vmatpush1.bf16.msra.mxu0 0
        %1050 = vmatprep.subr.bf16.mxu0 0
        %1051 = vmatpush1.bf16.msra.mxu0 0
        %1052 = vmatprep.subr.bf16.mxu0 0
        %1053 = vmatpush1.bf16.msra.mxu0 0
        %1054 = vmatprep.subr.bf16.mxu0 0
        %1055 = vmatpush1.bf16.msra.mxu0 0
        %1056 = vmatprep.mubr.bf16.mxu0 0
        %1057 = vmatmul.mubr.bf16.gmra.mrb[0].mxu0 %v1001
        %v1058 = vpop.f32.mrb[0].mxu0
        %v1059 = vadd.f32 0.0, %v1058
        %v1060 = vpop.f32.mrb[0].mxu0
        %v1061 = vpop.f32.mrb[0].mxu0
        %v1062 = vadd.f32 0.0, %v1061
        %v1063 = vpop.f32.mrb[0].mxu0
        %1064 = vmatprep.mubr.bf16.mxu0 0
        %1065 = vmatmul.mubr.bf16.gmra.mrb[0].mxu0 %v1004
        %v1066 = vpop.f32.mrb[0].mxu0
        %v1067 = vadd.f32 0.0, %v1066
        %v1068 = vpop.f32.mrb[0].mxu0
        %v1069 = vpop.f32.mrb[0].mxu0
        %v1070 = vadd.f32 0.0, %v1069
        %v1071 = vpop.f32.mrb[0].mxu0
        %1072 = vmatprep.mubr.bf16.mxu0 0
        %1073 = vmatmul.mubr.bf16.gmra.mrb[0].mxu0 %v1007
        %v1074 = vpop.f32.mrb[0].mxu0
        %v1075 = vadd.f32 0.0, %v1074
        %v1076 = vpop.f32.mrb[0].mxu0
        %v1077 = vpop.f32.mrb[0].mxu0
        %v1078 = vadd.f32 0.0, %v1077
        %v1079 = vpop.f32.mrb[0].mxu0
        %1080 = vmatprep.mubr.bf16.mxu0 0
        %1081 = vmatmul.mubr.bf16.gmra.mrb[0].mxu0 %v1010
        %v1082 = vpop.f32.mrb[0].mxu0
        %v1083 = vadd.f32 0.0, %v1082
        %v1084 = vpop.f32.mrb[0].mxu0
        %v1085 = vpop.f32.mrb[0].mxu0
        %v1086 = vadd.f32 0.0, %v1085
        %v1087 = vpop.f32.mrb[0].mxu0
        %1088 = vmatprep.mubr.bf16.mxu0 0
        %1089 = vmatmul.mubr.bf16.gmra.mrb[0].mxu0 %v1013
        %v1090 = vpop.f32.mrb[0].mxu0
        %v1091 = vadd.f32 0.0, %v1090
        %v1092 = vpop.f32.mrb[0].mxu0
        %v1093 = vpop.f32.mrb[0].mxu0
        %v1094 = vadd.f32 0.0, %v1093
        %v1095 = vpop.f32.mrb[0].mxu0
        %1096 = vmatprep.mubr.bf16.mxu0 0
        %1097 = vmatmul.mubr.bf16.gmra.mrb[0].mxu0 %v1016
        %v1098 = vpop.f32.mrb[0].mxu0
        %v1099 = vadd.f32 0.0, %v1098
        %v1100 = vpop.f32.mrb[0].mxu0
        %v1101 = vpop.f32.mrb[0].mxu0
        %v1102 = vadd.f32 0.0, %v1101
        %v1103 = vpop.f32.mrb[0].mxu0
        %1104 = vmatprep.mubr.bf16.mxu0 0
        %1105 = vmatmul.mubr.bf16.gmra.mrb[0].mxu0 %v1019
        %v1106 = vpop.f32.mrb[0].mxu0
        %v1107 = vadd.f32 0.0, %v1106
        %v1108 = vpop.f32.mrb[0].mxu0
        %v1109 = vpop.f32.mrb[0].mxu0
        %v1110 = vadd.f32 0.0, %v1109
        %v1111 = vpop.f32.mrb[0].mxu0
        %1112 = vmatprep.mubr.bf16.mxu0 0
        %1113 = vmatmul.mubr.bf16.gmra.mrb[0].mxu0 %v1022
        %v1114 = vpop.f32.mrb[0].mxu0
        %v1115 = vadd.f32 0.0, %v1114
        %v1116 = vpop.f32.mrb[0].mxu0
        %v1117 = vpop.f32.mrb[0].mxu0
        %v1118 = vadd.f32 0.0, %v1117
        %v1119 = vpop.f32.mrb[0].mxu0
        %1120 = vdwg.mxu0
        %1121 = vst [vmem:[%s260] sm:$0xff] %v1059
        %1122 = vst [vmem:[%s260 + $0x8] sm:$0xff] %v1062
        %1123 = vst [vmem:[%s260 + $0x10] sm:$0xff] %v1067
        %1124 = vst [vmem:[%s260 + $0x18] sm:$0xff] %v1070
        %1125 = vst [vmem:[%s260 + $0x20] sm:$0xff] %v1075
        %1126 = vst [vmem:[%s260 + $0x28] sm:$0xff] %v1078
        %1127 = vst [vmem:[%s260 + $0x30] sm:$0xff] %v1083
        %1128 = vst [vmem:[%s260 + $0x38] sm:$0xff] %v1086
        %1129 = vst [vmem:[%s260 + $0x40] sm:$0xff] %v1091
        %1130 = vst [vmem:[%s260 + $0x48] sm:$0xff] %v1094
        %1131 = vst [vmem:[%s260 + $0x50] sm:$0xff] %v1099
        %1132 = vst [vmem:[%s260 + $0x58] sm:$0xff] %v1102
        %1133 = vst [vmem:[%s260 + $0x60] sm:$0xff] %v1107
        %1134 = vst [vmem:[%s260 + $0x68] sm:$0xff] %v1110
        %1135 = vst [vmem:[%s260 + $0x70] sm:$0xff] %v1115
        %1136 = vst [vmem:[%s260 + $0x78] sm:$0xff] %v1118
        %s1137 = sand.u32 %s160, 1
        %s1138 = scalar_lea.sflag [#allocation4], %s1137
        %s1139 = sand.u32 %s160, 1
        %s1140 = smul.addr %s1139, 128
        %s1141 = scalar_lea.vmem [#allocation5], %s1140
        // Predicated region
        $region49: #{tpu_custom_call.1} parent=43 // pred_check
          %p1142 = pneg %p170
        $region50: #{tpu_custom_call.1} parent=43 // pred_check_branch
          %1144 = sbr.rel (%p1142) target = $region52
        $region51: #{tpu_custom_call.1} parent=43 // pred_region
          %s1146 = ssub.s32 2048, 2048
          %1147 = vsyncadd %s1138, %s1146
          %s1148 = smul.addr %s21, 16
          %s1149 = smul.addr %s1148, 128
          %s1150 = scalar_lea.hbm %s6, %s1149
          %s1151 = sshll.u32 %s1141, 4
          %s1152 = int_to_ptr.vmem [resolvable:$true] %s1151
          %1157 = dma.vmem_to_hbm [thread:$0]  %s1152, 2048, %s1150, %s1138, 128, 128, 8
        $region52: #{tpu_custom_call.1} parent=43 // pred_fallthru
          _
      $region44: #{tpu_custom_call.1} parent=5 // pred_fallthru
        _
      %p1158 = scmp.le.s32.totalorder 2, %s16
      // Predicated region
      $region53: #{tpu_custom_call.1} parent=5 // pred_check
        %p1159 = pneg %p1158
      $region54: #{tpu_custom_call.1} parent=5 // pred_check_branch
        %1161 = sbr.rel (%p1159) target = $region56
      $region55: #{tpu_custom_call.1} parent=5 // pred_region
        %s1162 = ssub.s32 %s16, 2
        // Predicated region
        $region57: #{tpu_custom_call.1} parent=55 // pred_check
          %p1163 = pneg %p176
        $region58: #{tpu_custom_call.1} parent=55 // pred_check_branch
          %1165 = sbr.rel (%p1163) target = $region60
        $region59: #{tpu_custom_call.1} parent=55 // pred_region
          %s1166 = sand.u32 %s161, 1
          %s1167 = scalar_lea.sflag [#allocation4], %s1166
          %s1168 = sand.u32 %s161, 1
          %s1169 = smul.addr %s1168, 128
          %s1170 = scalar_lea.vmem [#allocation5], %s1169
          %1171 = dma.done %s1167, 2048
        $region60: #{tpu_custom_call.1} parent=55 // pred_fallthru
          _
      $region56: #{tpu_custom_call.1} parent=5 // pred_fallthru
        _
    $region6: #{tpu_custom_call.1} parent=1 // loop_footer
      %s20 = sadd.s32 1, %s16
    $region7: #{tpu_custom_call.1} parent=1 // loop_footer_branch
      %15 = sbr.rel target = $region3
    $region8: #{tpu_custom_call.1} parent=1 // loop_exit
      _
    %1172 = vsyncpa [#allocation3], 1
    %s1173 = scalar_lea.sflag [#allocation3], 1
    %1174 = vsyncpa %s1173, 1
    %1175 = vsyncpa [#allocation4], 1
    %s1176 = scalar_lea.sflag [#allocation4], 1
    %1177 = vsyncpa %s1176, 1

</llo_original>
